<compile_context>
chip_gen: v7x
topology: tpu7x:2x2x1
jax: 0.10.0
libtpu: 0.0.40
codegen_flags: <defaults>
</compile_context>

<pallas_src>
import functools

import jax
import jax.numpy as jnp
from jax.experimental import pallas as pl
from jax.experimental.pallas import tpu as pltpu

BN_EPS = 1e-5  # PyTorch BatchNorm1d default eps
LANE = 128


def _round_up(n, m):
    return ((n + m - 1) // m) * m


def _encoder_kernel(*refs, batch, has_in_proj):
    """One grid step == one ReZero layer (layer index = program_id(0)).

    refs (has_in_proj=True):
      x_ref     [B, IDp]   f32   (fetched once; block index constant)
      w_in_ref  [IDp, Hp]  bf16  (pre-transposed in-projection weight)
      b_in_ref  [1, Hp]    f32
      w_ref     [Hp, Hp]   bf16  (this layer's pre-transposed weight)
      gamma_ref [1, Hp]    f32
      beta_ref  [1, Hp]    f32
      alpha_ref [n_layers] f32   (SMEM, whole array)
      o_ref     [B, Hp]    f32   (resident carry h; also the final output)
    """
    if has_in_proj:
        (x_ref, w_in_ref, b_in_ref, w_ref, gamma_ref, beta_ref,
         alpha_ref, o_ref) = refs
    else:
        x_ref, w_ref, gamma_ref, beta_ref, alpha_ref, o_ref = refs

    l = pl.program_id(0)

    @pl.when(l == 0)
    def _init():
        x = x_ref[...]
        if has_in_proj:
            h0 = jnp.dot(x.astype(jnp.bfloat16), w_in_ref[...],
                         preferred_element_type=jnp.float32) + b_in_ref[...]
        else:
            h0 = x
        o_ref[...] = h0

    h = o_ref[...]  # f32 [B, Hp]

    # Linear (per-layer bias dropped: it cancels inside BatchNorm).
    y = jnp.dot(h.astype(jnp.bfloat16), w_ref[...],
                preferred_element_type=jnp.float32)

    # BatchNorm1d, training mode (biased batch variance), one-pass stats.
    inv_b = 1.0 / batch
    mean = jnp.sum(y, axis=0, keepdims=True) * inv_b
    var = jnp.maximum(
        jnp.sum(y * y, axis=0, keepdims=True) * inv_b - mean * mean, 0.0)
    y_hat = (y - mean) * jax.lax.rsqrt(var + BN_EPS)
    z = gamma_ref[...] * y_hat + beta_ref[...]

    # ReLU + ReZero residual.
    alpha = alpha_ref[l]
    o_ref[...] = jnp.maximum(z, 0.0) * alpha + h
    # TODO(synk): BatchNorm1d running-stat (buffer) updates are not modeled;
    # only the training-mode forward math is reproduced.


def _vmem_bytes(B, IDp, Hp, has_in_proj):
    n = 0
    n += 2 * B * IDp * 4                   # x (double-buffered, f32)
    if has_in_proj:
        n += 2 * (IDp * Hp * 2 + Hp * 4)   # w_in (bf16) + b_in (f32)
    n += 2 * Hp * Hp * 2                   # streamed layer weight (bf16)
    n += 2 * 2 * Hp * 4                    # gamma + beta
    n += 2 * B * Hp * 4                    # resident output / carry
    return n + (4 << 20)                   # compiler scratch headroom


def encoder_forward(x, params, *, n_layers):
    B, input_dim = x.shape
    hidden = params["w"].shape[-1]
    has_in_proj = params["w_in"] is not None

    Hp = _round_up(hidden, LANE)
    IDp = _round_up(input_dim, LANE) if has_in_proj else Hp

    # --- pad to lane-dense shapes, weights to bf16 ---------------------------
    xp = jnp.zeros((B, IDp), jnp.float32).at[:, :input_dim].set(
        x.astype(jnp.float32))
    wp = jnp.zeros((n_layers, Hp, Hp), jnp.bfloat16).at[:, :hidden, :hidden].set(
        params["w"].astype(jnp.bfloat16))
    gp = jnp.zeros((n_layers, 1, Hp), jnp.float32).at[:, :, :hidden].set(
        params["gamma"])
    bp = jnp.zeros((n_layers, 1, Hp), jnp.float32).at[:, :, :hidden].set(
        params["beta"])
    alpha = params["alpha"].reshape(n_layers).astype(jnp.float32)

    args = [xp]
    in_specs = [pl.BlockSpec((B, IDp), lambda l: (0, 0))]
    if has_in_proj:
        w_in_p = jnp.zeros((IDp, Hp), jnp.bfloat16).at[:input_dim, :hidden].set(
            params["w_in"].astype(jnp.bfloat16))
        b_in_p = jnp.zeros((1, Hp), jnp.float32).at[:, :hidden].set(
            params["b_in"])
        args += [w_in_p, b_in_p]
        in_specs += [pl.BlockSpec((IDp, Hp), lambda l: (0, 0)),
                     pl.BlockSpec((1, Hp), lambda l: (0, 0))]
    args += [wp, gp, bp, alpha]
    in_specs += [
        pl.BlockSpec((None, Hp, Hp), lambda l: (l, 0, 0)),   # per-layer weight
        pl.BlockSpec((None, 1, Hp), lambda l: (l, 0, 0)),    # gamma
        pl.BlockSpec((None, 1, Hp), lambda l: (l, 0, 0)),    # beta
        pl.BlockSpec(memory_space=pltpu.MemorySpace.SMEM),   # alpha scalars
    ]

    kernel = functools.partial(_encoder_kernel, batch=B,
                               has_in_proj=has_in_proj)

    vmem_limit = max(_vmem_bytes(B, IDp, Hp, has_in_proj), 32 * 1024 * 1024)

    out_padded = pl.pallas_call(
        kernel,
        out_shape=jax.ShapeDtypeStruct((B, Hp), jnp.float32),
        grid=(n_layers,),
        in_specs=in_specs,
        out_specs=pl.BlockSpec((B, Hp), lambda l: (0, 0)),
        compiler_params=pltpu.CompilerParams(
            dimension_semantics=("arbitrary",),
            vmem_limit_bytes=int(vmem_limit)),
    )(*args)
    return out_padded[:, :hidden]


def encoder_reference(x, params, *, n_layers):
    """Pure-JAX reference mirroring the PyTorch forward (keeps the per-layer
    Linear bias and two-pass BN variance; weights rounded to bf16 to match the
    kernel's operand precision)."""
    h = x.astype(jnp.float32)
    if params["w_in"] is not None:
        w_in = params["w_in"].astype(jnp.bfloat16).astype(jnp.float32)
        h = (h.astype(jnp.bfloat16).astype(jnp.float32) @ w_in
             + params["b_in"])
    for l in range(n_layers):
        w = params["w"][l].astype(jnp.bfloat16).astype(jnp.float32)
        y = (h.astype(jnp.bfloat16).astype(jnp.float32) @ w
             + params["b"][l])
        mean = y.mean(axis=0, keepdims=True)
        var = ((y - mean) ** 2).mean(axis=0, keepdims=True)
        y_hat = (y - mean) / jnp.sqrt(var + BN_EPS)
        z = params["gamma"][l] * y_hat + params["beta"][l]
        h = jnp.maximum(z, 0.0) * params["alpha"][l] + h
    return h


def init_params(key, input_dim, hidden_dim, n_layers):
    """Deterministic synthetic parameters (shapes from the module __init__).

    PyTorch initializes ReZero.alpha = 0.0 (every block would be identity);
    small nonzero alphas are used so the full compute path is exercised.
    Linear weights are stored pre-transposed ([in, out]).
    """
    keys = jax.random.split(key, 7)
    params = {}
    if input_dim != hidden_dim:
        params["w_in"] = jax.random.normal(
            keys[0], (input_dim, hidden_dim), jnp.float32) * 0.1
        params["b_in"] = jax.random.normal(
            keys[1], (1, hidden_dim), jnp.float32) * 0.1
    else:
        params["w_in"] = None
        params["b_in"] = None
    params["w"] = jax.random.normal(
        keys[2], (n_layers, hidden_dim, hidden_dim), jnp.float32) * 0.1
    params["b"] = jax.random.normal(
        keys[3], (n_layers, 1, hidden_dim), jnp.float32) * 0.1
    params["gamma"] = 1.0 + 0.1 * jax.random.normal(
        keys[4], (n_layers, 1, hidden_dim), jnp.float32)
    params["beta"] = 0.1 * jax.random.normal(
        keys[5], (n_layers, 1, hidden_dim), jnp.float32)
    params["alpha"] = (0.25 + 0.05 * jnp.arange(n_layers, dtype=jnp.float32)
                       ).reshape(n_layers, 1, 1)
    return params


if __name__ == "__main__":
    B, INPUT_DIM, HIDDEN_DIM, N_LAYERS = 8, 16, 32, 2

    key = jax.random.PRNGKey(0)
    k_x, k_p = jax.random.split(key)
    x = jax.random.normal(k_x, (B, INPUT_DIM), jnp.float32)
    params = init_params(k_p, INPUT_DIM, HIDDEN_DIM, N_LAYERS)

    out = encoder_forward(x, params, n_layers=N_LAYERS)
    out = jax.block_until_ready(out)

    ref = encoder_reference(x, params, n_layers=N_LAYERS)
    assert out.shape == (B, HIDDEN_DIM)
    max_err = jnp.max(jnp.abs(out - ref))
    assert jnp.allclose(out, ref, rtol=2e-3, atol=2e-3), (
        f"max abs err = {max_err}")

    print("KERNEL_OK")
</pallas_src>

<mosaic_0001>
module attributes {stable_mosaic.version = 11 : i64} {
  func.func @_encoder_kernel(%arg0: i32, %arg1: memref<8x128xf32, #tpu.memory_space<vmem>>, %arg2: memref<128x128xbf16, #tpu.memory_space<vmem>>, %arg3: memref<1x128xf32, #tpu.memory_space<vmem>>, %arg4: memref<1x128x128xbf16, #tpu.memory_space<vmem>>, %arg5: memref<1x1x128xf32, #tpu.memory_space<vmem>>, %arg6: memref<1x1x128xf32, #tpu.memory_space<vmem>>, %arg7: memref<2xf32, #tpu.memory_space<smem>>, %arg8: memref<8x128xf32, #tpu.memory_space<vmem>>) attributes {dimension_semantics = [#tpu.dimension_semantics<arbitrary>], iteration_bounds = array<i64: 2>, scalar_prefetch = 0 : i64, scratch_operands = 0 : i64, tpu.core_type = #tpu.core_type<tc>, window_params = [{pipeline_mode = #tpu.pipeline_mode<synchronous>, transform_indices = @transform_0, window_bounds = array<i64: 8, 128>}, {pipeline_mode = #tpu.pipeline_mode<synchronous>, transform_indices = @transform_1, window_bounds = array<i64: 128, 128>}, {pipeline_mode = #tpu.pipeline_mode<synchronous>, transform_indices = @transform_2, window_bounds = array<i64: 1, 128>}, {transform_indices = @transform_3, window_bounds = array<i64: 1, 128, 128>}, {transform_indices = @transform_4, window_bounds = array<i64: 1, 1, 128>}, {transform_indices = @transform_5, window_bounds = array<i64: 1, 1, 128>}, {transform_indices = @transform_6, window_bounds = array<i64: 2>}, {pipeline_mode = #tpu.pipeline_mode<synchronous>, transform_indices = @transform_7, window_bounds = array<i64: 8, 128>}]} {
    %c0_i32 = arith.constant 0 : i32
    %0 = arith.cmpi eq, %arg0, %c0_i32 : i32
    %1 = arith.extui %0 : i1 to i32
    %c0_i32_0 = arith.constant 0 : i32
    %2 = arith.cmpi ne, %1, %c0_i32_0 : i32
    scf.if %2 {
      %c0_20 = arith.constant 0 : index
      %c0_21 = arith.constant 0 : index
      %44 = vector.load %arg1[%c0_20, %c0_21] : memref<8x128xf32, #tpu.memory_space<vmem>>, vector<8x128xf32>
      %45 = arith.truncf %44 : vector<8x128xf32> to vector<8x128xbf16>
      %c0_22 = arith.constant 0 : index
      %c0_23 = arith.constant 0 : index
      %46 = vector.load %arg2[%c0_22, %c0_23] : memref<128x128xbf16, #tpu.memory_space<vmem>>, vector<128x128xbf16>
      %cst_24 = arith.constant dense<0.000000e+00> : vector<8x128xf32>
      %47 = tpu.matmul %45, %46, %cst_24 {dimension_numbers = #tpu.dot_dimension_numbers<[1], [0], [0], [1], [0, 0, 1, 1], [], []>} : vector<8x128xbf16>, vector<128x128xbf16>, vector<8x128xf32> -> vector<8x128xf32>
      %c0_25 = arith.constant 0 : index
      %c0_26 = arith.constant 0 : index
      %48 = vector.load %arg3[%c0_25, %c0_26] : memref<1x128xf32, #tpu.memory_space<vmem>>, vector<1x128xf32>
      %49 = vector.broadcast %48 : vector<1x128xf32> to vector<8x128xf32>
      %50 = arith.addf %47, %49 : vector<8x128xf32>
      %c0_27 = arith.constant 0 : index
      %c0_28 = arith.constant 0 : index
      %51 = vector.load %arg8[%c0_27, %c0_28] : memref<8x128xf32, #tpu.memory_space<vmem>>, vector<8x128xf32>
      tpu.vector_store %arg8[%c0_27, %c0_28], %50 {strides = array<i32>} : memref<8x128xf32, #tpu.memory_space<vmem>>, vector<8x128xf32>,
    } else {
    }
    %c0 = arith.constant 0 : index
    %c0_1 = arith.constant 0 : index
    %3 = vector.load %arg8[%c0, %c0_1] : memref<8x128xf32, #tpu.memory_space<vmem>>, vector<8x128xf32>
    %4 = arith.truncf %3 : vector<8x128xf32> to vector<8x128xbf16>
    %c0_2 = arith.constant 0 : index
    %c0_3 = arith.constant 0 : index
    %c0_4 = arith.constant 0 : index
    %5 = vector.load %arg4[%c0_2, %c0_3, %c0_4] : memref<1x128x128xbf16, #tpu.memory_space<vmem>>, vector<1x128x128xbf16>
    %6 = vector.shape_cast %5 : vector<1x128x128xbf16> to vector<128x128xbf16>
    %cst = arith.constant dense<0.000000e+00> : vector<8x128xf32>
    %7 = tpu.matmul %4, %6, %cst {dimension_numbers = #tpu.dot_dimension_numbers<[1], [0], [0], [1], [0, 0, 1, 1], [], []>} : vector<8x128xbf16>, vector<128x128xbf16>, vector<8x128xf32> -> vector<8x128xf32>
    %cst_5 = arith.constant dense<0.000000e+00> : vector<128xf32>
    %8 = vector.multi_reduction <add>, %7, %cst_5 [0] : vector<8x128xf32> to vector<128xf32>
    %9 = vector.shape_cast %8 : vector<128xf32> to vector<1x128xf32>
    %cst_6 = arith.constant 1.250000e-01 : f32
    %10 = vector.broadcast %cst_6 : f32 to vector<1x128xf32>
    %11 = arith.mulf %9, %10 : vector<1x128xf32>
    %12 = arith.mulf %7, %7 : vector<8x128xf32>
    %cst_7 = arith.constant dense<0.000000e+00> : vector<128xf32>
    %13 = vector.multi_reduction <add>, %12, %cst_7 [0] : vector<8x128xf32> to vector<128xf32>
    %14 = vector.shape_cast %13 : vector<128xf32> to vector<1x128xf32>
    %cst_8 = arith.constant 1.250000e-01 : f32
    %15 = vector.broadcast %cst_8 : f32 to vector<1x128xf32>
    %16 = arith.mulf %14, %15 : vector<1x128xf32>
    %17 = arith.mulf %11, %11 : vector<1x128xf32>
    %18 = arith.subf %16, %17 : vector<1x128xf32>
    %cst_9 = arith.constant 0.000000e+00 : f32
    %19 = vector.broadcast %cst_9 : f32 to vector<1x128xf32>
    %20 = arith.maximumf %18, %19 : vector<1x128xf32>
    %21 = vector.broadcast %11 : vector<1x128xf32> to vector<8x128xf32>
    %22 = arith.subf %7, %21 : vector<8x128xf32>
    %cst_10 = arith.constant 9.99999974E-6 : f32
    %23 = vector.broadcast %cst_10 : f32 to vector<1x128xf32>
    %24 = arith.addf %20, %23 : vector<1x128xf32>
    %25 = math.rsqrt %24 : vector<1x128xf32>
    %26 = vector.broadcast %25 : vector<1x128xf32> to vector<8x128xf32>
    %27 = arith.mulf %22, %26 : vector<8x128xf32>
    %c0_11 = arith.constant 0 : index
    %c0_12 = arith.constant 0 : index
    %c0_13 = arith.constant 0 : index
    %28 = vector.load %arg5[%c0_11, %c0_12, %c0_13] : memref<1x1x128xf32, #tpu.memory_space<vmem>>, vector<1x1x128xf32>
    %29 = vector.shape_cast %28 : vector<1x1x128xf32> to vector<1x128xf32>
    %30 = vector.broadcast %29 : vector<1x128xf32> to vector<8x128xf32>
    %31 = arith.mulf %30, %27 : vector<8x128xf32>
    %c0_14 = arith.constant 0 : index
    %c0_15 = arith.constant 0 : index
    %c0_16 = arith.constant 0 : index
    %32 = vector.load %arg6[%c0_14, %c0_15, %c0_16] : memref<1x1x128xf32, #tpu.memory_space<vmem>>, vector<1x1x128xf32>
    %33 = vector.shape_cast %32 : vector<1x1x128xf32> to vector<1x128xf32>
    %34 = vector.broadcast %33 : vector<1x128xf32> to vector<8x128xf32>
    %35 = arith.addf %31, %34 : vector<8x128xf32>
    %36 = arith.index_cast %arg0 : i32 to index
    %37 = memref.load %arg7[%36] : memref<2xf32, #tpu.memory_space<smem>>
    %cst_17 = arith.constant 0.000000e+00 : f32
    %38 = vector.broadcast %cst_17 : f32 to vector<8x128xf32>
    %39 = arith.maximumf %35, %38 : vector<8x128xf32>
    %40 = vector.broadcast %37 : f32 to vector<8x128xf32>
    %41 = arith.mulf %39, %40 : vector<8x128xf32>
    %42 = arith.addf %41, %3 : vector<8x128xf32>
    %c0_18 = arith.constant 0 : index
    %c0_19 = arith.constant 0 : index
    %43 = vector.load %arg8[%c0_18, %c0_19] : memref<8x128xf32, #tpu.memory_space<vmem>>, vector<8x128xf32>
    tpu.vector_store %arg8[%c0_18, %c0_19], %42 {strides = array<i32>} : memref<8x128xf32, #tpu.memory_space<vmem>>, vector<8x128xf32>,
    return
  }
  func.func @transform_0(%arg0: i32) -> (i32, i32) {
    %c0_i32 = arith.constant 0 : i32
    %c0_i32_0 = arith.constant 0 : i32
    %c0_i32_1 = arith.constant 0 : i32
    return %c0_i32, %c0_i32_0 : i32, i32
  }
  func.func @transform_1(%arg0: i32) -> (i32, i32) {
    %c0_i32 = arith.constant 0 : i32
    %c0_i32_0 = arith.constant 0 : i32
    %c0_i32_1 = arith.constant 0 : i32
    return %c0_i32, %c0_i32_0 : i32, i32
  }
  func.func @transform_2(%arg0: i32) -> (i32, i32) {
    %c0_i32 = arith.constant 0 : i32
    %c0_i32_0 = arith.constant 0 : i32
    %c0_i32_1 = arith.constant 0 : i32
    return %c0_i32, %c0_i32_0 : i32, i32
  }
  func.func @transform_3(%arg0: i32) -> (i32, i32, i32) {
    %c0_i32 = arith.constant 0 : i32
    %c0_i32_0 = arith.constant 0 : i32
    %c0_i32_1 = arith.constant 0 : i32
    return %arg0, %c0_i32, %c0_i32_0 : i32, i32, i32
  }
  func.func @transform_4(%arg0: i32) -> (i32, i32, i32) {
    %c0_i32 = arith.constant 0 : i32
    %c0_i32_0 = arith.constant 0 : i32
    %c0_i32_1 = arith.constant 0 : i32
    return %arg0, %c0_i32, %c0_i32_0 : i32, i32, i32
  }
  func.func @transform_5(%arg0: i32) -> (i32, i32, i32) {
    %c0_i32 = arith.constant 0 : i32
    %c0_i32_0 = arith.constant 0 : i32
    %c0_i32_1 = arith.constant 0 : i32
    return %arg0, %c0_i32, %c0_i32_0 : i32, i32, i32
  }
  func.func @transform_6(%arg0: i32) -> i32 {
    %c0_i32 = arith.constant 0 : i32
    %c0_i32_0 = arith.constant 0 : i32
    return %c0_i32 : i32
  }
  func.func @transform_7(%arg0: i32) -> (i32, i32) {
    %c0_i32 = arith.constant 0 : i32
    %c0_i32_0 = arith.constant 0 : i32
    %c0_i32_1 = arith.constant 0 : i32
    return %c0_i32, %c0_i32_0 : i32, i32
  }
}

</mosaic_0001>

<llo_original>
// kernel: tpu_custom_call.1
$region0: #{tpu_custom_call.1}
  #allocation0 [shape = 'u32[]', space=smem, size = 0x4, offset = 0x4, fixed_abs, tag = 'smem constant byte address 0x4 - core index']
  #allocation1 [shape = 'u32[144,128]{1,0:T(1,128)}', space=vmem, size = 0x12000, scoped, tag = 'internal scratch']
  %s0 = inlined_call_operand.hbm [shape: f32[8,128], index: 0, kind: input, shape index: {}]
  %s1 = inlined_call_operand.hbm [shape: bf16[128,128], index: 1, kind: input, shape index: {}]
  %s2 = inlined_call_operand.vmem [shape: f32[1,128], index: 2, kind: input, shape index: {}]
  %s3 = inlined_call_operand.hbm [shape: bf16[2,128,128], index: 3, kind: input, shape index: {}]
  %s4 = inlined_call_operand.vmem [shape: f32[2,1,128], index: 4, kind: input, shape index: {}]
  %s5 = inlined_call_operand.vmem [shape: f32[2,1,128], index: 5, kind: input, shape index: {}]
  %s6 = inlined_call_operand.vmem [shape: f32[2], index: 6, kind: input, shape index: {}]
  %s7 = inlined_call_operand.hbm [shape: f32[8,128], index: 7, kind: output, shape index: {}]
  %s8 = sld [smem:[#allocation0]]
  $region81: #{tpu_custom_call.1} parent=0
    _
  %s10 = ssub.s32 1, %s8
  %s11 = scalar_select 0, %s10, %s8
  $region1: #{tpu_custom_call.1} parent=0
    #allocation2 [shape = 'u8[4096]{0}', space=vmem, size = 0x1000, scoped, tag = 'input window, operand 0, single buffered']
    #allocation3 [shape = 's32[2]{0}', space=sflag, size = 0x8, scoped, tag = 'scoped memory for tpu_custom_call.1']
    #allocation4 [shape = 's32[2]{0}', space=sflag, size = 0x8, scoped, tag = 'scoped memory for tpu_custom_call.1']
    #allocation5 [shape = 's32[2]{0}', space=sflag, size = 0x8, scoped, tag = 'scoped memory for tpu_custom_call.1']
    #allocation6 [shape = 'u8[32768]{0}', space=vmem, size = 0x8000, scoped, tag = 'input window, operand 1, single buffered']
    #allocation7 [shape = 's32[1]{0}', space=sflag, size = 0x4, scoped, tag = 'scoped memory for tpu_custom_call.1']
    #allocation8 [shape = 'u8[65536]{0}', space=vmem, size = 0x10000, scoped, tag = 'input window, operand 3']
    #allocation9 [shape = 'u8[512]{0}', space=smem, size = 0x200, scoped, tag = 'input window, operand 6, single buffered']
    #allocation10 [shape = 'u8[4096]{0}', space=vmem, size = 0x1000, scoped, tag = 'output window, operand 0, single buffered']
    %12 = vsyncpa [#allocation3], 0
    %13 = vsyncpa [#allocation7], 0
    %14 = vsyncpa [#allocation5], 0
    %15 = vsyncpa [#allocation4], 0
    loop: start=0, step=1, limit=4
    $region2: #{tpu_custom_call.1} parent=1 // loop_pre_header
      _
    $region3: #{tpu_custom_call.1} parent=1 // loop_header
      %s17 = sphi 0, %s21
      %p18 = scmp.ge.s32.totalorder %s17, 4
      %s25 = sphi 0, %s25
      %s27 = sphi 0, %s25
      %s28 = sphi 0, %s27
      %s42 = sphi 0, %s28
      %s46 = sphi 0, %s46
      %s48 = sphi 0, %s46
      %s49 = sphi 0, %s48
      %s63 = sphi 0, %s49
      %s67 = sphi 0, %s67
      %s69 = sphi 0, %s67
      %s70 = sphi 0, %s69
      %s84 = sphi 0, %s70
      %s90 = sphi 0, %s92
      %s93 = sphi 0, %s90
      %s94 = sphi 0, %s93
      %s110 = sphi 0, %s94
      %s116 = sphi 0, %s118
      %s119 = sphi 0, %s116
      %s120 = sphi 0, %s119
      %s136 = sphi 0, %s120
      %s142 = sphi 0, %s144
      %s145 = sphi 0, %s142
      %s146 = sphi 0, %s145
      %s162 = sphi 0, %s146
      %s166 = sphi 0, %s166
      %s168 = sphi 0, %s166
      %s169 = sphi 0, %s168
      %s183 = sphi 0, %s169
      %s187 = sphi 0, %s187
      %s189 = sphi 0, %s187
      %s190 = sphi 0, %s189
      %s204 = sphi 0, %s190
    $region4: #{tpu_custom_call.1} parent=1 // loop_header_branch
      %20 = sbr.rel (%p18) target = $region8
    $region5: #{tpu_custom_call.1} parent=1 // loop_body
      %s22 = ssub.s32 %s17, 1
      %s23 = ssub.s32 %s17, 2
      %s24 = sadd.s32 %s17, 1
      %s26 = sadd.s32 %s25, 1
      %p29 = scmp.eq.s32.totalorder %s17, 1
      %p30 = scmp.ne.s32.totalorder %s25, %s27
      %p31 = scmp.eq.s32.totalorder %s17, 0
      %p32 = por %p30, %p31
      %p33 = scmp.ne.s32.totalorder %s25, %s27
      %p34 = scmp.eq.s32.totalorder %s22, 1
      %p35 = por %p33, %p34
      %p36 = scmp.ne.s32.totalorder %s27, %s28
      %p37 = scmp.eq.s32.totalorder %s22, 0
      %p38 = por %p36, %p37
      %p39 = scmp.ne.s32.totalorder %s27, %s28
      %p40 = scmp.eq.s32.totalorder %s23, 1
      %p41 = por %p39, %p40
      %p43 = scmp.ne.s32.totalorder %s28, %s42
      %p44 = scmp.eq.s32.totalorder %s23, 0
      %p45 = por %p43, %p44
      %s47 = sadd.s32 %s46, 1
      %p50 = scmp.eq.s32.totalorder %s17, 1
      %p51 = scmp.ne.s32.totalorder %s46, %s48
      %p52 = scmp.eq.s32.totalorder %s17, 0
      %p53 = por %p51, %p52
      %p54 = scmp.ne.s32.totalorder %s46, %s48
      %p55 = scmp.eq.s32.totalorder %s22, 1
      %p56 = por %p54, %p55
      %p57 = scmp.ne.s32.totalorder %s48, %s49
      %p58 = scmp.eq.s32.totalorder %s22, 0
      %p59 = por %p57, %p58
      %p60 = scmp.ne.s32.totalorder %s48, %s49
      %p61 = scmp.eq.s32.totalorder %s23, 1
      %p62 = por %p60, %p61
      %p64 = scmp.ne.s32.totalorder %s49, %s63
      %p65 = scmp.eq.s32.totalorder %s23, 0
      %p66 = por %p64, %p65
      %s68 = sadd.s32 %s67, 1
      %p71 = scmp.eq.s32.totalorder %s17, 1
      %p72 = scmp.ne.s32.totalorder %s67, %s69
      %p73 = scmp.eq.s32.totalorder %s17, 0
      %p74 = por %p72, %p73
      %p75 = scmp.ne.s32.totalorder %s67, %s69
      %p76 = scmp.eq.s32.totalorder %s22, 1
      %p77 = por %p75, %p76
      %p78 = scmp.ne.s32.totalorder %s69, %s70
      %p79 = scmp.eq.s32.totalorder %s22, 0
      %p80 = por %p78, %p79
      %p81 = scmp.ne.s32.totalorder %s69, %s70
      %p82 = scmp.eq.s32.totalorder %s23, 1
      %p83 = por %p81, %p82
      %p85 = scmp.ne.s32.totalorder %s70, %s84
      %p86 = scmp.eq.s32.totalorder %s23, 0
      %p87 = por %p85, %p86
      %s88 = ssub.s32 %s17, %s24
      %p89 = scmp.eq.s32.totalorder %s88, 0
      %s91 = sadd.s32 %s90, 1
      %s92 = scalar_select %p89, %s90, %s91
      %p95 = pneg %p89
      %p96 = scmp.eq.s32.totalorder %s17, 1
      %p97 = por %p95, %p96
      %p98 = scmp.ne.s32.totalorder %s90, %s93
      %p99 = scmp.eq.s32.totalorder %s17, 0
      %p100 = por %p98, %p99
      %p101 = scmp.ne.s32.totalorder %s90, %s93
      %p102 = scmp.eq.s32.totalorder %s22, 1
      %p103 = por %p101, %p102
      %p104 = scmp.ne.s32.totalorder %s93, %s94
      %p105 = scmp.eq.s32.totalorder %s22, 0
      %p106 = por %p104, %p105
      %p107 = scmp.ne.s32.totalorder %s93, %s94
      %p108 = scmp.eq.s32.totalorder %s23, 1
      %p109 = por %p107, %p108
      %p111 = scmp.ne.s32.totalorder %s94, %s110
      %p112 = scmp.eq.s32.totalorder %s23, 0
      %p113 = por %p111, %p112
      %s114 = ssub.s32 %s17, %s24
      %p115 = scmp.eq.s32.totalorder %s114, 0
      %s117 = sadd.s32 %s116, 1
      %s118 = scalar_select %p115, %s116, %s117
      %p121 = pneg %p115
      %p122 = scmp.eq.s32.totalorder %s17, 1
      %p123 = por %p121, %p122
      %p124 = scmp.ne.s32.totalorder %s116, %s119
      %p125 = scmp.eq.s32.totalorder %s17, 0
      %p126 = por %p124, %p125
      %p127 = scmp.ne.s32.totalorder %s116, %s119
      %p128 = scmp.eq.s32.totalorder %s22, 1
      %p129 = por %p127, %p128
      %p130 = scmp.ne.s32.totalorder %s119, %s120
      %p131 = scmp.eq.s32.totalorder %s22, 0
      %p132 = por %p130, %p131
      %p133 = scmp.ne.s32.totalorder %s119, %s120
      %p134 = scmp.eq.s32.totalorder %s23, 1
      %p135 = por %p133, %p134
      %p137 = scmp.ne.s32.totalorder %s120, %s136
      %p138 = scmp.eq.s32.totalorder %s23, 0
      %p139 = por %p137, %p138
      %s140 = ssub.s32 %s17, %s24
      %p141 = scmp.eq.s32.totalorder %s140, 0
      %s143 = sadd.s32 %s142, 1
      %s144 = scalar_select %p141, %s142, %s143
      %p147 = pneg %p141
      %p148 = scmp.eq.s32.totalorder %s17, 1
      %p149 = por %p147, %p148
      %p150 = scmp.ne.s32.totalorder %s142, %s145
      %p151 = scmp.eq.s32.totalorder %s17, 0
      %p152 = por %p150, %p151
      %p153 = scmp.ne.s32.totalorder %s142, %s145
      %p154 = scmp.eq.s32.totalorder %s22, 1
      %p155 = por %p153, %p154
      %p156 = scmp.ne.s32.totalorder %s145, %s146
      %p157 = scmp.eq.s32.totalorder %s22, 0
      %p158 = por %p156, %p157
      %p159 = scmp.ne.s32.totalorder %s145, %s146
      %p160 = scmp.eq.s32.totalorder %s23, 1
      %p161 = por %p159, %p160
      %p163 = scmp.ne.s32.totalorder %s146, %s162
      %p164 = scmp.eq.s32.totalorder %s23, 0
      %p165 = por %p163, %p164
      %s167 = sadd.s32 %s166, 1
      %p170 = scmp.eq.s32.totalorder %s17, 1
      %p171 = scmp.ne.s32.totalorder %s166, %s168
      %p172 = scmp.eq.s32.totalorder %s17, 0
      %p173 = por %p171, %p172
      %p174 = scmp.ne.s32.totalorder %s166, %s168
      %p175 = scmp.eq.s32.totalorder %s22, 1
      %p176 = por %p174, %p175
      %p177 = scmp.ne.s32.totalorder %s168, %s169
      %p178 = scmp.eq.s32.totalorder %s22, 0
      %p179 = por %p177, %p178
      %p180 = scmp.ne.s32.totalorder %s168, %s169
      %p181 = scmp.eq.s32.totalorder %s23, 1
      %p182 = por %p180, %p181
      %p184 = scmp.ne.s32.totalorder %s169, %s183
      %p185 = scmp.eq.s32.totalorder %s23, 0
      %p186 = por %p184, %p185
      %s188 = sadd.s32 %s187, 1
      %p191 = scmp.eq.s32.totalorder %s17, 1
      %p192 = scmp.ne.s32.totalorder %s187, %s189
      %p193 = scmp.eq.s32.totalorder %s17, 0
      %p194 = por %p192, %p193
      %p195 = scmp.ne.s32.totalorder %s187, %s189
      %p196 = scmp.eq.s32.totalorder %s22, 1
      %p197 = por %p195, %p196
      %p198 = scmp.ne.s32.totalorder %s189, %s190
      %p199 = scmp.eq.s32.totalorder %s22, 0
      %p200 = por %p198, %p199
      %p201 = scmp.ne.s32.totalorder %s189, %s190
      %p202 = scmp.eq.s32.totalorder %s23, 1
      %p203 = por %p201, %p202
      %p205 = scmp.ne.s32.totalorder %s190, %s204
      %p206 = scmp.eq.s32.totalorder %s23, 0
      %p207 = por %p205, %p206
      %p208 = scmp.le.s32.totalorder 1, %s17
      %p209 = scmp.lt.s32.totalorder %s17, 3
      %p210 = pnand %p208, %p209
      %p211 = pneg %p210
      // Predicated region
      $region9: #{tpu_custom_call.1} parent=5 // pred_check
        _
      $region10: #{tpu_custom_call.1} parent=5 // pred_check_branch
        %213 = sbr.rel (%p210) target = $region12
      $region11: #{tpu_custom_call.1} parent=5 // pred_region
        %s214 = ssub.s32 %s17, 1
        // Predicated region
        $region13: #{tpu_custom_call.1} parent=11 // pred_check
          %p215 = pneg %p38
        $region14: #{tpu_custom_call.1} parent=11 // pred_check_branch
          %217 = sbr.rel (%p215) target = $region16
        $region15: #{tpu_custom_call.1} parent=11 // pred_region
          %s219 = ssub.s32 128, 128
          %220 = vsyncadd [#allocation3], %s219
          %s222 = sshll.u32 [#allocation2], 4
          %s223 = int_to_ptr.vmem [resolvable:$true] %s222
          %225 = dma.hbm_to_vmem [thread:$0]  %s0, 128, %s223, [#allocation3]
        $region16: #{tpu_custom_call.1} parent=11 // pred_fallthru
          _
        // Predicated region
        $region17: #{tpu_custom_call.1} parent=11 // pred_check
          %p226 = pneg %p59
        $region18: #{tpu_custom_call.1} parent=11 // pred_check_branch
          %228 = sbr.rel (%p226) target = $region20
        $region19: #{tpu_custom_call.1} parent=11 // pred_region
          %s230 = ssub.s32 1024, 1024
          %231 = vsyncadd [#allocation7], %s230
          %s232 = sshll.u32 [#allocation6], 4
          %s233 = int_to_ptr.vmem [resolvable:$true] %s232
          %238 = dma.hbm_to_vmem [thread:$0]  %s1, 1024, %s233, [#allocation7], 64, 64, 4
        $region20: #{tpu_custom_call.1} parent=11 // pred_fallthru
          _
        // Predicated region
        $region21: #{tpu_custom_call.1} parent=11 // pred_check
          %p239 = pneg %p80
        $region22: #{tpu_custom_call.1} parent=11 // pred_check_branch
          %241 = sbr.rel (%p239) target = $region24
        $region23: #{tpu_custom_call.1} parent=11 // pred_region
          _
        $region24: #{tpu_custom_call.1} parent=11 // pred_fallthru
          _
        // Predicated region
        $region25: #{tpu_custom_call.1} parent=11 // pred_check
          %p242 = pneg %p179
        $region26: #{tpu_custom_call.1} parent=11 // pred_check_branch
          %244 = sbr.rel (%p242) target = $region28
        $region27: #{tpu_custom_call.1} parent=11 // pred_region
          %s246 = ssub.s32 16, 16
          %247 = vsyncadd [#allocation5], %s246
          %s249 = sshll.u32 %s6, 4
          %s250 = int_to_ptr.vmem [resolvable:$true] %s249
          %252 = dma.vmem_to_smem %s250, 16, [#allocation9], [#allocation5]
        $region28: #{tpu_custom_call.1} parent=11 // pred_fallthru
          _
      $region12: #{tpu_custom_call.1} parent=5 // pred_fallthru
        _
      %p253 = scmp.lt.s32.totalorder %s17, 2
      // Predicated region
      $region29: #{tpu_custom_call.1} parent=5 // pred_check
        %p254 = pneg %p253
      $region30: #{tpu_custom_call.1} parent=5 // pred_check_branch
        %256 = sbr.rel (%p254) target = $region32
      $region31: #{tpu_custom_call.1} parent=5 // pred_region
        // Predicated region
        $region33: #{tpu_custom_call.1} parent=31 // pred_check
          %p257 = pneg %p100
        $region34: #{tpu_custom_call.1} parent=31 // pred_check_branch
          %259 = sbr.rel (%p257) target = $region36
        $region35: #{tpu_custom_call.1} parent=31 // pred_region
          %s260 = sand.u32 %s17, 1
          %s261 = scalar_lea.sflag [#allocation3], %s260
          %s262 = sand.u32 %s90, 1
          %s263 = smul.addr %s262, 64
          %s264 = scalar_lea.vmem [#allocation8], %s263
          %s266 = ssub.s32 1024, 1024
          %267 = vsyncadd %s261, %s266
          %s268 = smul.addr %s17, 16
          %s269 = smul.addr %s268, 64
          %s270 = scalar_lea.hbm %s3, %s269
          %s271 = sshll.u32 %s264, 4
          %s272 = int_to_ptr.vmem [resolvable:$true] %s271
          %277 = dma.hbm_to_vmem [thread:$0]  %s270, 1024, %s272, %s261, 64, 64, 4
        $region36: #{tpu_custom_call.1} parent=31 // pred_fallthru
          _
        // Predicated region
        $region37: #{tpu_custom_call.1} parent=31 // pred_check
          %p278 = pneg %p126
        $region38: #{tpu_custom_call.1} parent=31 // pred_check_branch
          %280 = sbr.rel (%p278) target = $region40
        $region39: #{tpu_custom_call.1} parent=31 // pred_region
          %p281 = scmp.lt.s32.totalorder %s17, 1
          %s282 = scalar_select %p281, %s17, 1
          %s283 = scalar_lea.vmem %s4, %s282
        $region40: #{tpu_custom_call.1} parent=31 // pred_fallthru
          _
        // Predicated region
        $region41: #{tpu_custom_call.1} parent=31 // pred_check
          %p284 = pneg %p152
        $region42: #{tpu_custom_call.1} parent=31 // pred_check_branch
          %286 = sbr.rel (%p284) target = $region44
        $region43: #{tpu_custom_call.1} parent=31 // pred_region
          %p287 = scmp.lt.s32.totalorder %s17, 1
          %s288 = scalar_select %p287, %s17, 1
          %s289 = scalar_lea.vmem %s5, %s288
        $region44: #{tpu_custom_call.1} parent=31 // pred_fallthru
          _
      $region32: #{tpu_custom_call.1} parent=5 // pred_fallthru
        _
      %p290 = scmp.le.s32.totalorder 1, %s17
      %p291 = scmp.lt.s32.totalorder %s17, 3
      %p292 = pnand %p290, %p291
      %p293 = pneg %p292
      // Predicated region
      $region45: #{tpu_custom_call.1} parent=5 // pred_check
        _
      $region46: #{tpu_custom_call.1} parent=5 // pred_check_branch
        %295 = sbr.rel (%p292) target = $region48
      $region47: #{tpu_custom_call.1} parent=5 // pred_region
        %s296 = ssub.s32 %s17, 1
        // Predicated region
        $region49: #{tpu_custom_call.1} parent=47 // pred_check
          %p297 = pneg %p38
        $region50: #{tpu_custom_call.1} parent=47 // pred_check_branch
          %299 = sbr.rel (%p297) target = $region52
        $region51: #{tpu_custom_call.1} parent=47 // pred_region
          %300 = dma.done [#allocation3], 128
        $region52: #{tpu_custom_call.1} parent=47 // pred_fallthru
          _
        // Predicated region
        $region53: #{tpu_custom_call.1} parent=47 // pred_check
          %p301 = pneg %p59
        $region54: #{tpu_custom_call.1} parent=47 // pred_check_branch
          %303 = sbr.rel (%p301) target = $region56
        $region55: #{tpu_custom_call.1} parent=47 // pred_region
          %304 = dma.done [#allocation7], 1024
        $region56: #{tpu_custom_call.1} parent=47 // pred_fallthru
          _
        %s305 = sand.u32 %s22, 1
        %s306 = scalar_lea.sflag [#allocation3], %s305
        %s307 = sand.u32 %s93, 1
        %s308 = smul.addr %s307, 64
        %s309 = scalar_lea.vmem [#allocation8], %s308
        // Predicated region
        $region57: #{tpu_custom_call.1} parent=47 // pred_check
          %p310 = pneg %p106
        $region58: #{tpu_custom_call.1} parent=47 // pred_check_branch
          %312 = sbr.rel (%p310) target = $region60
        $region59: #{tpu_custom_call.1} parent=47 // pred_region
          %313 = dma.done %s306, 1024
        $region60: #{tpu_custom_call.1} parent=47 // pred_fallthru
          _
        // Predicated region
        $region61: #{tpu_custom_call.1} parent=47 // pred_check
          %p314 = pneg %p179
        $region62: #{tpu_custom_call.1} parent=47 // pred_check_branch
          %316 = sbr.rel (%p314) target = $region64
        $region63: #{tpu_custom_call.1} parent=47 // pred_region
          %317 = dma.done [#allocation5], 16
        $region64: #{tpu_custom_call.1} parent=47 // pred_fallthru
          _
        %318 = sfence
        %p319 = pneg %p38
        %p320 = pneg %p35
        %p321 = pneg %p59
        %p322 = pneg %p56
        %p323 = pneg %p80
        %p324 = pneg %p77
        %s325 = sand.u32 %s22, 1
        %s326 = scalar_lea.sflag [#allocation3], %s325
        %s327 = sand.u32 %s93, 1
        %s328 = smul.addr %s327, 64
        %s329 = scalar_lea.vmem [#allocation8], %s328
        %p330 = pneg %p106
        %p331 = pneg %p103
        %p332 = scmp.lt.s32.totalorder %s22, 1
        %s333 = scalar_select %p332, %s22, 1
        %s334 = scalar_lea.vmem %s4, %s333
        %p335 = pneg %p132
        %p336 = pneg %p129
        %p337 = scmp.lt.s32.totalorder %s22, 1
        %s338 = scalar_select %p337, %s22, 1
        %s339 = scalar_lea.vmem %s5, %s338
        %p340 = pneg %p158
        %p341 = pneg %p155
        %p342 = pneg %p179
        %p343 = pneg %p176
        %p344 = pneg %p200
        %p345 = pneg %p197
        %p346 = scmp.lt.s32.totalorder %s22, 1
        %s347 = scalar_select %p346, %s22, 1
        %s348 = scalar_lea.vmem %s4, %s347
        %p349 = scmp.lt.s32.totalorder %s22, 1
        %s350 = scalar_select %p349, %s22, 1
        %s351 = scalar_lea.vmem %s5, %s350
        %p353 = scmp.eq.s32.totalorder %s22, 0
        // Predicated region
        $region65: #{tpu_custom_call.1} parent=47 // pred_check
          %p354 = pneg %p353
        $region66: #{tpu_custom_call.1} parent=47 // pred_check_branch
          %356 = sbr.rel (%p354) target = $region68
        $region67: #{tpu_custom_call.1} parent=47 // pred_region
          %v357 = vld [vmem:[#allocation2] sm:$0xff]
          %v358 = vpack.c.bf16 %v357, %v357
          %v359 = vld [vmem:[#allocation6] sm:$0xf]
          %v360 = vld [vmem:[#allocation6 + $0x4] sm:$0xf]
          %v361 = vld [vmem:[#allocation6 + $0x8] sm:$0xf]
          %v362 = vld [vmem:[#allocation6 + $0xc] sm:$0xf]
          %v363 = vld [vmem:[#allocation6 + $0x10] sm:$0xf]
          %v364 = vld [vmem:[#allocation6 + $0x14] sm:$0xf]
          %v365 = vld [vmem:[#allocation6 + $0x18] sm:$0xf]
          %v366 = vld [vmem:[#allocation6 + $0x1c] sm:$0xf]
          %v367 = vld [vmem:[#allocation6 + $0x20] sm:$0xf]
          %v368 = vld [vmem:[#allocation6 + $0x24] sm:$0xf]
          %v369 = vld [vmem:[#allocation6 + $0x28] sm:$0xf]
          %v370 = vld [vmem:[#allocation6 + $0x2c] sm:$0xf]
          %v371 = vld [vmem:[#allocation6 + $0x30] sm:$0xf]
          %v372 = vld [vmem:[#allocation6 + $0x34] sm:$0xf]
          %v373 = vld [vmem:[#allocation6 + $0x38] sm:$0xf]
          %v374 = vld [vmem:[#allocation6 + $0x3c] sm:$0xf]
          %v375 = vld [vmem:[%s2] sm:$0x1]
          %v377 = vlaneseq
          %v378 = vshrl.u32 %v377, 7
          %v379 = vsub.s32 0, %v378
          %v380 = vrot.slane %v375, %v379
          %v398 = vunpack.c.l.b16 %v359
          %v399 = vunpack.c.l.b16 %v360
          %v400 = vunpack.c.l.b16 %v361
          %v401 = vunpack.c.l.b16 %v362
          %v402 = vunpack.c.l.b16 %v363
          %v403 = vunpack.c.l.b16 %v364
          %v404 = vunpack.c.l.b16 %v365
          %v405 = vunpack.c.l.b16 %v366
          %v406 = vunpack.c.l.b16 %v367
          %v407 = vunpack.c.l.b16 %v368
          %v408 = vunpack.c.l.b16 %v369
          %v409 = vunpack.c.l.b16 %v370
          %v410 = vunpack.c.l.b16 %v371
          %v411 = vunpack.c.l.b16 %v372
          %v412 = vunpack.c.l.b16 %v373
          %v413 = vunpack.c.l.b16 %v374
          %v414 = vpack.c.b16 %v399, %v398
          %v415 = vpack.c.b16 %v401, %v400
          %v416 = vpack.c.b16 %v403, %v402
          %v417 = vpack.c.b16 %v405, %v404
          %v418 = vpack.c.b16 %v407, %v406
          %v419 = vpack.c.b16 %v409, %v408
          %v420 = vpack.c.b16 %v411, %v410
          %v421 = vpack.c.b16 %v413, %v412
          %430 = vmatprep.subr.bf16.mxu0 0
          %431 = vmatpush1.bf16.msra.mxu0 %v414
          %432 = vmatprep.subr.bf16.mxu0 0
          %433 = vmatpush1.bf16.msra.mxu0 %v415
          %434 = vmatprep.subr.bf16.mxu0 0
          %435 = vmatpush1.bf16.msra.mxu0 %v416
          %436 = vmatprep.subr.bf16.mxu0 0
          %437 = vmatpush1.bf16.msra.mxu0 %v417
          %438 = vmatprep.subr.bf16.mxu0 0
          %439 = vmatpush1.bf16.msra.mxu0 %v418
          %440 = vmatprep.subr.bf16.mxu0 0
          %441 = vmatpush1.bf16.msra.mxu0 %v419
          %442 = vmatprep.subr.bf16.mxu0 0
          %443 = vmatpush1.bf16.msra.mxu0 %v420
          %444 = vmatprep.subr.bf16.mxu0 0
          %445 = vmatpush1.bf16.msra.mxu0 %v421
          %446 = vmatprep.subr.bf16.mxu0 0
          %447 = vmatpush1.bf16.msra.mxu0 0
          %448 = vmatprep.subr.bf16.mxu0 0
          %449 = vmatpush1.bf16.msra.mxu0 0
          %450 = vmatprep.subr.bf16.mxu0 0
          %451 = vmatpush1.bf16.msra.mxu0 0
          %452 = vmatprep.subr.bf16.mxu0 0
          %453 = vmatpush1.bf16.msra.mxu0 0
          %454 = vmatprep.subr.bf16.mxu0 0
          %455 = vmatpush1.bf16.msra.mxu0 0
          %456 = vmatprep.subr.bf16.mxu0 0
          %457 = vmatpush1.bf16.msra.mxu0 0
          %458 = vmatprep.subr.bf16.mxu0 0
          %459 = vmatpush1.bf16.msra.mxu0 0
          %460 = vmatprep.subr.bf16.mxu0 0
          %461 = vmatpush1.bf16.msra.mxu0 0
          %462 = vmatprep.mubr.bf16.mxu0 0
          %463 = vmatmul.mubr.bf16.gmra.mrb[0].mxu0 %v358
          %v464 = vpop.f32.mrb[0].mxu0
          %v465 = vadd.f32 %v380, %v464
          %v466 = vpop.f32.mrb[0].mxu0
          %v467 = vpop.f32.mrb[0].mxu0
          %v468 = vpop.f32.mrb[0].mxu0
          %469 = vdwg.mxu0
          %470 = vst [vmem:[#allocation10] sm:$0xff] %v465
        $region68: #{tpu_custom_call.1} parent=47 // pred_fallthru
          _
        %v471 = vld [vmem:[#allocation10] sm:$0xff]
        %v472 = vpack.c.bf16 %v471, %v471
        %v473 = vld [vmem:[%s309] sm:$0xf]
        %v474 = vld [vmem:[%s309 + $0x4] sm:$0xf]
        %v475 = vld [vmem:[%s309 + $0x8] sm:$0xf]
        %v476 = vld [vmem:[%s309 + $0xc] sm:$0xf]
        %v477 = vld [vmem:[%s309 + $0x10] sm:$0xf]
        %v478 = vld [vmem:[%s309 + $0x14] sm:$0xf]
        %v479 = vld [vmem:[%s309 + $0x18] sm:$0xf]
        %v480 = vld [vmem:[%s309 + $0x1c] sm:$0xf]
        %v481 = vld [vmem:[%s309 + $0x20] sm:$0xf]
        %v482 = vld [vmem:[%s309 + $0x24] sm:$0xf]
        %v483 = vld [vmem:[%s309 + $0x28] sm:$0xf]
        %v484 = vld [vmem:[%s309 + $0x2c] sm:$0xf]
        %v485 = vld [vmem:[%s309 + $0x30] sm:$0xf]
        %v486 = vld [vmem:[%s309 + $0x34] sm:$0xf]
        %v487 = vld [vmem:[%s309 + $0x38] sm:$0xf]
        %v488 = vld [vmem:[%s309 + $0x3c] sm:$0xf]
        %v505 = vunpack.c.l.b16 %v473
        %v506 = vunpack.c.l.b16 %v474
        %v507 = vunpack.c.l.b16 %v475
        %v508 = vunpack.c.l.b16 %v476
        %v509 = vunpack.c.l.b16 %v477
        %v510 = vunpack.c.l.b16 %v478
        %v511 = vunpack.c.l.b16 %v479
        %v512 = vunpack.c.l.b16 %v480
        %v513 = vunpack.c.l.b16 %v481
        %v514 = vunpack.c.l.b16 %v482
        %v515 = vunpack.c.l.b16 %v483
        %v516 = vunpack.c.l.b16 %v484
        %v517 = vunpack.c.l.b16 %v485
        %v518 = vunpack.c.l.b16 %v486
        %v519 = vunpack.c.l.b16 %v487
        %v520 = vunpack.c.l.b16 %v488
        %v521 = vpack.c.b16 %v506, %v505
        %v522 = vpack.c.b16 %v508, %v507
        %v523 = vpack.c.b16 %v510, %v509
        %v524 = vpack.c.b16 %v512, %v511
        %v525 = vpack.c.b16 %v514, %v513
        %v526 = vpack.c.b16 %v516, %v515
        %v527 = vpack.c.b16 %v518, %v517
        %v528 = vpack.c.b16 %v520, %v519
        %537 = vmatprep.subr.bf16.mxu0 0
        %538 = vmatpush1.bf16.msra.mxu0 %v521
        %539 = vmatprep.subr.bf16.mxu0 0
        %540 = vmatpush1.bf16.msra.mxu0 %v522
        %541 = vmatprep.subr.bf16.mxu0 0
        %542 = vmatpush1.bf16.msra.mxu0 %v523
        %543 = vmatprep.subr.bf16.mxu0 0
        %544 = vmatpush1.bf16.msra.mxu0 %v524
        %545 = vmatprep.subr.bf16.mxu0 0
        %546 = vmatpush1.bf16.msra.mxu0 %v525
        %547 = vmatprep.subr.bf16.mxu0 0
        %548 = vmatpush1.bf16.msra.mxu0 %v526
        %549 = vmatprep.subr.bf16.mxu0 0
        %550 = vmatpush1.bf16.msra.mxu0 %v527
        %551 = vmatprep.subr.bf16.mxu0 0
        %552 = vmatpush1.bf16.msra.mxu0 %v528
        %553 = vmatprep.subr.bf16.mxu0 0
        %554 = vmatpush1.bf16.msra.mxu0 0
        %555 = vmatprep.subr.bf16.mxu0 0
        %556 = vmatpush1.bf16.msra.mxu0 0
        %557 = vmatprep.subr.bf16.mxu0 0
        %558 = vmatpush1.bf16.msra.mxu0 0
        %559 = vmatprep.subr.bf16.mxu0 0
        %560 = vmatpush1.bf16.msra.mxu0 0
        %561 = vmatprep.subr.bf16.mxu0 0
        %562 = vmatpush1.bf16.msra.mxu0 0
        %563 = vmatprep.subr.bf16.mxu0 0
        %564 = vmatpush1.bf16.msra.mxu0 0
        %565 = vmatprep.subr.bf16.mxu0 0
        %566 = vmatpush1.bf16.msra.mxu0 0
        %567 = vmatprep.subr.bf16.mxu0 0
        %568 = vmatpush1.bf16.msra.mxu0 0
        %569 = vmatprep.mubr.bf16.mxu0 0
        %570 = vmatmul.mubr.bf16.gmra.mrb[0].mxu0 %v472
        %v571 = vpop.f32.mrb[0].mxu0
        %v572 = vadd.f32 0.0, %v571
        %v573 = vpop.f32.mrb[0].mxu0
        %v574 = vpop.f32.mrb[0].mxu0
        %v575 = vpop.f32.mrb[0].mxu0
        %576 = vdwg.mxu0
        %v577 = vrot.slane %v572, 4
        %v578 = vadd.f32 %v572, %v577
        %v579 = vrot.slane %v578, 2
        %v580 = vadd.f32 %v578, %v579
        %v581 = vrot.slane %v580, 1
        %v582 = vadd.f32 %v580, %v581
        %v583 = vmul.f32 %v582, 0.125
        %v584 = vmul.f32 %v572, %v572
        %v585 = vrot.slane %v584, 4
        %v586 = vadd.f32 %v584, %v585
        %v587 = vrot.slane %v586, 2
        %v588 = vadd.f32 %v586, %v587
        %v589 = vrot.slane %v588, 1
        %v590 = vadd.f32 %v588, %v589
        %v591 = vmul.f32 %v590, 0.125
        %v592 = vmul.f32 %v583, %v583
        %v593 = vsub.f32 %v591, %v592
        %v594 = vmax.f32 %v593, 0.0
        %v595 = vsub.f32 %v572, %v583
        %v596 = vadd.f32 %v594, 1e-05
        %v597 = vrsqrt.pop %v596
        %v598 = vmul.f32 %v595, %v597
        %v599 = vld [vmem:[%s348] sm:$0x1]
        %v601 = vlaneseq
        %v602 = vshrl.u32 %v601, 7
        %v603 = vsub.s32 0, %v602
        %v604 = vrot.slane %v599, %v603
        %v606 = vmul.f32 %v604, %v598
        %v607 = vld [vmem:[%s351] sm:$0x1]
        %v609 = vlaneseq
        %v610 = vshrl.u32 %v609, 7
        %v611 = vsub.s32 0, %v610
        %v612 = vrot.slane %v607, %v611
        %v614 = vadd.f32 %v606, %v612
        %s615 = sld [smem:[#allocation9 + %s22]]
        %v616 = vmax.f32 %v614, 0.0
        %v617 = vstv %s615
        %v618 = vmul.f32 %v616, %v617
        %v619 = vadd.f32 %v618, %v471
        %620 = vst [vmem:[#allocation10] sm:$0xff] %v619
        // Predicated region
        $region69: #{tpu_custom_call.1} parent=47 // pred_check
          %p621 = pneg %p197
        $region70: #{tpu_custom_call.1} parent=47 // pred_check_branch
          %623 = sbr.rel (%p621) target = $region72
        $region71: #{tpu_custom_call.1} parent=47 // pred_region
          %s625 = ssub.s32 128, 128
          %626 = vsyncadd [#allocation4], %s625
          %s628 = sshll.u32 [#allocation10], 4
          %s629 = int_to_ptr.vmem [resolvable:$true] %s628
          %631 = dma.vmem_to_hbm [thread:$0]  %s629, 128, %s7, [#allocation4]
        $region72: #{tpu_custom_call.1} parent=47 // pred_fallthru
          _
        // Predicated region
        $region73: #{tpu_custom_call.1} parent=47 // pred_check
          %p632 = pneg %p197
        $region74: #{tpu_custom_call.1} parent=47 // pred_check_branch
          %634 = sbr.rel (%p632) target = $region76
        $region75: #{tpu_custom_call.1} parent=47 // pred_region
          %635 = dma.done [#allocation4], 128
        $region76: #{tpu_custom_call.1} parent=47 // pred_fallthru
          _
      $region48: #{tpu_custom_call.1} parent=5 // pred_fallthru
        _
      %p636 = scmp.le.s32.totalorder 2, %s17
      // Predicated region
      $region77: #{tpu_custom_call.1} parent=5 // pred_check
        %p637 = pneg %p636
      $region78: #{tpu_custom_call.1} parent=5 // pred_check_branch
        %639 = sbr.rel (%p637) target = $region80
      $region79: #{tpu_custom_call.1} parent=5 // pred_region
        %s640 = ssub.s32 %s17, 2
      $region80: #{tpu_custom_call.1} parent=5 // pred_fallthru
        _
    $region6: #{tpu_custom_call.1} parent=1 // loop_footer
      %s21 = sadd.s32 1, %s17
    $region7: #{tpu_custom_call.1} parent=1 // loop_footer_branch
      %16 = sbr.rel target = $region3
    $region8: #{tpu_custom_call.1} parent=1 // loop_exit
      _
    %641 = vsyncpa [#allocation3], 1
    %s642 = scalar_lea.sflag [#allocation3], 1
    %643 = vsyncpa %s642, 1
    %644 = vsyncpa [#allocation7], 1
    %645 = vsyncpa [#allocation4], 1
    %s646 = scalar_lea.sflag [#allocation4], 1
    %647 = vsyncpa %s646, 1
    %648 = vsyncpa [#allocation5], 1
    %s649 = scalar_lea.sflag [#allocation5], 1
    %650 = vsyncpa %s649, 1

</llo_original>
